<compile_context>
chip_gen: v6e
topology: v6e:2x2x1
jax: 0.10.0
libtpu: 0.0.40
codegen_flags: <defaults>
</compile_context>

<pallas_src>
import functools

import jax
import jax.numpy as jnp
from jax.experimental import pallas as pl
from jax.experimental.pallas import tpu as pltpu


def _affine_dynamics_kernel(xT_ref, w1t_ref, b1_ref, w2t_ref, b2_ref, o_ref, *, d_in):
    # xT_ref: [d_in + d_obs, tile] with particles on lanes.  Only the first d_in
    # feature rows (latent state) feed the dynamics; static sublane slice is free.
    x = xT_ref[:d_in, :]
    # h = tanh(W1^T x + b1)                  -> [d_h, tile]   (lane-dense)
    h = jnp.tanh(
        jnp.dot(w1t_ref[...], x, preferred_element_type=jnp.float32) + b1_ref[...]
    )
    # mean^T = W_eff^T h + b_eff             -> [d_out, tile] (lane-dense store)
    o_ref[...] = (
        jnp.dot(w2t_ref[...], h, preferred_element_type=jnp.float32) + b2_ref[...]
    ).astype(o_ref.dtype)


def _particle_tiling(n, max_tile=512):
    """Pick (padded particle count, lane-tile size).

    Lane tiles are multiples of 128 (dense vst path).  The particle axis is padded
    so the grid always has >= 2 steps, allowing v7x megacore to shard it across
    both TensorCores; on v5e/v6e the extra step is negligible.
    """
    n_pad = 256 * pl.cdiv(n, 256)
    tile = max(128, min(max_tile, ((n_pad // 2) // 128) * 128))
    n_pad = tile * pl.cdiv(n_pad, tile)
    return n_pad, tile


def affine_dynamics_mean_pallas(x, w1, b1, w_eff, b_eff, d_in, d_obs):
    """mean = tanh(x[:, :d_in] @ w1 + b1) @ w_eff + b_eff, fused in one kernel.

    x: [N, d_in + d_obs] float32 (full particle array, observation columns included;
    they are sliced off inside the kernel).  Returns [N, d_out] float32.
    """
    N, d_feat = x.shape
    assert d_feat == d_in + d_obs
    d_h = w1.shape[1]
    d_out = w_eff.shape[1]

    n_pad, tile = _particle_tiling(N)
    grid = (n_pad // tile,)

    # Transposed, particle-on-lane layout (layout plumbing only).
    xT = jnp.pad(x, ((0, n_pad - N), (0, 0))).T              # [d_feat, n_pad]
    w1t = w1.T                                               # [d_h, d_in]
    b1c = b1.reshape(d_h, 1)                                 # [d_h, 1]
    w2t = w_eff.T                                            # [d_out, d_h]
    b2c = b_eff.reshape(d_out, 1)                            # [d_out, 1]

    meanT = pl.pallas_call(
        functools.partial(_affine_dynamics_kernel, d_in=d_in),
        out_shape=jax.ShapeDtypeStruct((d_out, n_pad), x.dtype),
        grid_spec=pltpu.PrefetchScalarGridSpec(
            num_scalar_prefetch=0,
            grid=grid,
            in_specs=[
                pl.BlockSpec((d_feat, tile), lambda i: (0, i)),  # x^T lane tile
                pl.BlockSpec((d_h, d_in), lambda i: (0, 0)),     # W1^T (resident)
                pl.BlockSpec((d_h, 1), lambda i: (0, 0)),        # b1 column
                pl.BlockSpec((d_out, d_h), lambda i: (0, 0)),    # W_eff^T (resident)
                pl.BlockSpec((d_out, 1), lambda i: (0, 0)),      # b_eff column
            ],
            out_specs=pl.BlockSpec((d_out, tile), lambda i: (0, i)),
        ),
        compiler_params=pltpu.CompilerParams(
            dimension_semantics=("parallel",),
        ),
    )(xT, w1t, b1c, w2t, b2c)

    return meanT[:, :N].T                                    # [N, d_out]


class AffineBootstrapProposalPallas:
    """JAX/Pallas port of AffineBootstrapProposal.

    forward(x) -> (mean, var):
      mean = mu_t + beta_t * A(dynamics(x[:, :-d_obs]))
      var  = log(1 + exp(tau_t)) if log_flag else exp(tau_t), times ones((N, 1))

    The dynamics MLP parameters (w1, b1, w2, b2) are supplied explicitly; the
    affine head (A_w [, A_b], beta_t, mu_t) is folded into the second MLP layer
    so the whole mean path is one fused Pallas kernel.
    """

    def __init__(self, d_in, d_out, d_obs, mlp_params, A_w, tau_t, beta_t, mu_t,
                 A_b=None, log_flag=True):
        self.d_in = d_in
        self.d_out = d_out
        self.d_obs = d_obs
        self.log_flag = log_flag
        self.tau_t = tau_t
        w1, b1, w2, b2 = mlp_params
        self.w1, self.b1 = w1, b1
        # Fold A (y @ A_w^T [+ A_b]), beta_t (elementwise scale) and mu_t (shift)
        # into the second MLP layer:  mean = tanh(z @ w1 + b1) @ w_eff + b_eff
        w2a = w2 @ A_w.T                                         # [d_h, d_out]
        b2a = b2 @ A_w.T + (A_b if A_b is not None else 0.0)     # [d_out]
        self.w_eff = w2a * beta_t[None, :]
        self.b_eff = mu_t + beta_t * b2a

    def get_proposal_params(self, x):
        mean = affine_dynamics_mean_pallas(
            x, self.w1, self.b1, self.w_eff, self.b_eff, self.d_in, self.d_obs)
        var = jnp.exp(self.tau_t)
        if self.log_flag:
            var = jnp.log1p(var)
        n = mean.shape[0]
        return mean, var * jnp.ones((n, 1), dtype=mean.dtype)

    def sample(self, x, no_samples, key):
        # Matches the PyTorch broadcasting (valid when no_samples is
        # broadcast-compatible with the particle count, as in the original).
        # TODO(synk): fuse Gaussian sampling (pltpu.prng_seed/prng_random_bits)
        # into the mean kernel if sample() becomes the hot path.
        mean, var = self.get_proposal_params(x)
        noise = jax.random.normal(key, (no_samples, self.d_out), dtype=mean.dtype)
        return mean + jnp.sqrt(var) * noise

    def __call__(self, x):
        return self.get_proposal_params(x)


if __name__ == "__main__":
    # Small deterministic setup consistent with the module:
    #   latent dim d_in = d_out = 4, observation dim d_obs = 4,
    #   N = 16 particles, MLP hidden width = 32.
    d_in, d_out, d_obs, d_hidden = 4, 4, 4, 32
    n_particles = 16

    key = jax.random.PRNGKey(0)
    kx, kw1, kb1, kw2, kb2, ka, kt, kbt, kmu = jax.random.split(key, 9)

    w1 = jax.random.normal(kw1, (d_in, d_hidden), dtype=jnp.float32) / jnp.sqrt(d_in)
    b1 = 0.01 * jax.random.normal(kb1, (d_hidden,), dtype=jnp.float32)
    w2 = jax.random.normal(kw2, (d_hidden, d_out), dtype=jnp.float32) / jnp.sqrt(d_hidden)
    b2 = 0.01 * jax.random.normal(kb2, (d_out,), dtype=jnp.float32)

    # Affine-head parameters.  (PyTorch initializes tau/beta/mu to zeros; the demo
    # uses nonzero values so the fused kernel path is exercised numerically.)
    A_w = jax.random.normal(ka, (d_out, d_out), dtype=jnp.float32) / jnp.sqrt(d_out)
    tau_t = 0.1 * jax.random.normal(kt, (d_out,), dtype=jnp.float32)
    beta_t = 1.0 + 0.1 * jax.random.normal(kbt, (d_out,), dtype=jnp.float32)
    mu_t = 0.1 * jax.random.normal(kmu, (d_out,), dtype=jnp.float32)

    proposal = AffineBootstrapProposalPallas(
        d_in, d_out, d_obs, (w1, b1, w2, b2), A_w, tau_t, beta_t, mu_t,
        A_b=None, log_flag=True)

    # x carries [latent_state | observation] per particle: [N, d_in + d_obs].
    x = jax.random.normal(kx, (n_particles, d_in + d_obs), dtype=jnp.float32)

    mean, var = proposal(x)
    mean = jax.block_until_ready(mean)
    var = jax.block_until_ready(var)

    # Pure-JAX reference of the original PyTorch forward.
    dyn = jnp.tanh(x[:, :-d_obs] @ w1 + b1) @ w2 + b2
    ref_mean = mu_t + beta_t * (dyn @ A_w.T)
    ref_var = jnp.log1p(jnp.exp(tau_t)) * jnp.ones((n_particles, 1), jnp.float32)

    assert mean.shape == (n_particles, d_out)
    assert var.shape == (n_particles, d_out)
    assert jnp.allclose(mean, ref_mean, atol=1e-4, rtol=1e-4)
    assert jnp.allclose(var, ref_var, atol=1e-6, rtol=1e-6)

    print("KERNEL_OK")
</pallas_src>

<mosaic_0001>
module attributes {stable_mosaic.version = 11 : i64} {
  func.func @_affine_dynamics_kernel(%arg0: i32, %arg1: memref<8x128xf32, #tpu.memory_space<vmem>>, %arg2: memref<32x4xf32, #tpu.memory_space<vmem>>, %arg3: memref<32x1xf32, #tpu.memory_space<vmem>>, %arg4: memref<4x32xf32, #tpu.memory_space<vmem>>, %arg5: memref<4x1xf32, #tpu.memory_space<vmem>>, %arg6: memref<4x128xf32, #tpu.memory_space<vmem>>) attributes {dimension_semantics = [#tpu.dimension_semantics<parallel>], iteration_bounds = array<i64: 2>, scalar_prefetch = 0 : i64, scratch_operands = 0 : i64, tpu.core_type = #tpu.core_type<tc>, window_params = [{transform_indices = @transform_0, window_bounds = array<i64: 8, 128>}, {pipeline_mode = #tpu.pipeline_mode<synchronous>, transform_indices = @transform_1, window_bounds = array<i64: 32, 4>}, {pipeline_mode = #tpu.pipeline_mode<synchronous>, transform_indices = @transform_2, window_bounds = array<i64: 32, 1>}, {pipeline_mode = #tpu.pipeline_mode<synchronous>, transform_indices = @transform_3, window_bounds = array<i64: 4, 32>}, {pipeline_mode = #tpu.pipeline_mode<synchronous>, transform_indices = @transform_4, window_bounds = array<i64: 4, 1>}, {transform_indices = @transform_5, window_bounds = array<i64: 4, 128>}]} {
    %c0 = arith.constant 0 : index
    %c0_0 = arith.constant 0 : index
    %0 = vector.load %arg1[%c0, %c0_0] : memref<8x128xf32, #tpu.memory_space<vmem>>, vector<4x128xf32>
    %c0_1 = arith.constant 0 : index
    %c0_2 = arith.constant 0 : index
    %1 = vector.load %arg2[%c0_1, %c0_2] : memref<32x4xf32, #tpu.memory_space<vmem>>, vector<32x4xf32>
    %cst = arith.constant dense<0.000000e+00> : vector<32x128xf32>
    %2 = tpu.matmul %1, %0, %cst {dimension_numbers = #tpu.dot_dimension_numbers<[1], [0], [0], [1], [0, 0, 1, 1], [], []>} : vector<32x4xf32>, vector<4x128xf32>, vector<32x128xf32> -> vector<32x128xf32>
    %c0_3 = arith.constant 0 : index
    %c0_4 = arith.constant 0 : index
    %3 = vector.load %arg3[%c0_3, %c0_4] : memref<32x1xf32, #tpu.memory_space<vmem>>, vector<32x1xf32>
    %4 = vector.broadcast %3 : vector<32x1xf32> to vector<32x128xf32>
    %5 = arith.addf %2, %4 : vector<32x128xf32>
    %6 = math.tanh %5 : vector<32x128xf32>
    %c0_5 = arith.constant 0 : index
    %c0_6 = arith.constant 0 : index
    %7 = vector.load %arg4[%c0_5, %c0_6] : memref<4x32xf32, #tpu.memory_space<vmem>>, vector<4x32xf32>
    %cst_7 = arith.constant dense<0.000000e+00> : vector<4x128xf32>
    %8 = tpu.matmul %7, %6, %cst_7 {dimension_numbers = #tpu.dot_dimension_numbers<[1], [0], [0], [1], [0, 0, 1, 1], [], []>} : vector<4x32xf32>, vector<32x128xf32>, vector<4x128xf32> -> vector<4x128xf32>
    %c0_8 = arith.constant 0 : index
    %c0_9 = arith.constant 0 : index
    %9 = vector.load %arg5[%c0_8, %c0_9] : memref<4x1xf32, #tpu.memory_space<vmem>>, vector<4x1xf32>
    %10 = vector.broadcast %9 : vector<4x1xf32> to vector<4x128xf32>
    %11 = arith.addf %8, %10 : vector<4x128xf32>
    %c0_10 = arith.constant 0 : index
    %c0_11 = arith.constant 0 : index
    %12 = vector.load %arg6[%c0_10, %c0_11] : memref<4x128xf32, #tpu.memory_space<vmem>>, vector<4x128xf32>
    tpu.vector_store %arg6[%c0_10, %c0_11], %11 {strides = array<i32>} : memref<4x128xf32, #tpu.memory_space<vmem>>, vector<4x128xf32>,
    return
  }
  func.func @transform_0(%arg0: i32) -> (i32, i32) {
    %c0_i32 = arith.constant 0 : i32
    %c0_i32_0 = arith.constant 0 : i32
    return %c0_i32, %arg0 : i32, i32
  }
  func.func @transform_1(%arg0: i32) -> (i32, i32) {
    %c0_i32 = arith.constant 0 : i32
    %c0_i32_0 = arith.constant 0 : i32
    %c0_i32_1 = arith.constant 0 : i32
    return %c0_i32, %c0_i32_0 : i32, i32
  }
  func.func @transform_2(%arg0: i32) -> (i32, i32) {
    %c0_i32 = arith.constant 0 : i32
    %c0_i32_0 = arith.constant 0 : i32
    %c0_i32_1 = arith.constant 0 : i32
    return %c0_i32, %c0_i32_0 : i32, i32
  }
  func.func @transform_3(%arg0: i32) -> (i32, i32) {
    %c0_i32 = arith.constant 0 : i32
    %c0_i32_0 = arith.constant 0 : i32
    %c0_i32_1 = arith.constant 0 : i32
    return %c0_i32, %c0_i32_0 : i32, i32
  }
  func.func @transform_4(%arg0: i32) -> (i32, i32) {
    %c0_i32 = arith.constant 0 : i32
    %c0_i32_0 = arith.constant 0 : i32
    %c0_i32_1 = arith.constant 0 : i32
    return %c0_i32, %c0_i32_0 : i32, i32
  }
  func.func @transform_5(%arg0: i32) -> (i32, i32) {
    %c0_i32 = arith.constant 0 : i32
    %c0_i32_0 = arith.constant 0 : i32
    return %c0_i32, %arg0 : i32, i32
  }
}

</mosaic_0001>

<llo_original>
// kernel: tpu_custom_call.1
$region0: #{tpu_custom_call.1}
  #allocation0 [shape = 'u32[]', space=smem, size = 0x4, offset = 0x4, fixed_abs, tag = 'smem constant byte address 0x4 - core index']
  #allocation1 [shape = 'u32[144,128]{1,0:T(1,128)}', space=vmem, size = 0x12000, scoped, tag = 'internal scratch']
  %s0 = inlined_call_operand.vmem [shape: f32[8,256], index: 0, kind: input, shape index: {}]
  %s1 = inlined_call_operand.vmem [shape: f32[32,4], index: 1, kind: input, shape index: {}]
  %s2 = inlined_call_operand.vmem [shape: f32[32,1], index: 2, kind: input, shape index: {}]
  %s3 = inlined_call_operand.vmem [shape: f32[4,32], index: 3, kind: input, shape index: {}]
  %s4 = inlined_call_operand.vmem [shape: f32[4,1], index: 4, kind: input, shape index: {}]
  %s5 = inlined_call_operand.hbm [shape: f32[4,256], index: 5, kind: output, shape index: {}]
  %s6 = sld [smem:[#allocation0]]
  $region53: #{tpu_custom_call.1} parent=0
    _
  %s8 = ssub.s32 1, %s6
  %s9 = scalar_select 0, %s8, %s6
  $region1: #{tpu_custom_call.1} parent=0
    #allocation2 [shape = 'u8[4096]{0}', space=vmem, size = 0x1000, scoped, tag = 'output window, operand 0']
    #allocation3 [shape = 's32[2]{0}', space=sflag, size = 0x8, scoped, tag = 'scoped memory for tpu_custom_call.1']
    %10 = vsyncpa [#allocation3], 0
    %s11 = scalar_lea.sflag [#allocation3], 1
    %12 = vsyncpa %s11, 0
    loop: start=0, step=1, limit=4
    $region2: #{tpu_custom_call.1} parent=1 // loop_pre_header
      _
    $region3: #{tpu_custom_call.1} parent=1 // loop_header
      %s14 = sphi 0, %s18
      %p15 = scmp.ge.s32.totalorder %s14, 4
      %s24 = sphi 0, %s26
      %s27 = sphi 0, %s24
      %s28 = sphi 0, %s27
      %s44 = sphi 0, %s28
      %s48 = sphi 0, %s48
      %s50 = sphi 0, %s48
      %s51 = sphi 0, %s50
      %s65 = sphi 0, %s51
      %s69 = sphi 0, %s69
      %s71 = sphi 0, %s69
      %s72 = sphi 0, %s71
      %s86 = sphi 0, %s72
      %s90 = sphi 0, %s90
      %s92 = sphi 0, %s90
      %s93 = sphi 0, %s92
      %s107 = sphi 0, %s93
      %s111 = sphi 0, %s111
      %s113 = sphi 0, %s111
      %s114 = sphi 0, %s113
      %s128 = sphi 0, %s114
      %s134 = sphi 0, %s136
      %s137 = sphi 0, %s134
      %s138 = sphi 0, %s137
      %s154 = sphi 0, %s138
    $region4: #{tpu_custom_call.1} parent=1 // loop_header_branch
      %17 = sbr.rel (%p15) target = $region8
    $region5: #{tpu_custom_call.1} parent=1 // loop_body
      %s19 = ssub.s32 %s14, 1
      %s20 = ssub.s32 %s14, 2
      %s21 = sadd.s32 %s14, 1
      %s22 = ssub.s32 %s14, %s21
      %p23 = scmp.eq.s32.totalorder %s22, 0
      %s25 = sadd.s32 %s24, 1
      %s26 = scalar_select %p23, %s24, %s25
      %p29 = pneg %p23
      %p30 = scmp.eq.s32.totalorder %s14, 1
      %p31 = por %p29, %p30
      %p32 = scmp.ne.s32.totalorder %s24, %s27
      %p33 = scmp.eq.s32.totalorder %s14, 0
      %p34 = por %p32, %p33
      %p35 = scmp.ne.s32.totalorder %s24, %s27
      %p36 = scmp.eq.s32.totalorder %s19, 1
      %p37 = por %p35, %p36
      %p38 = scmp.ne.s32.totalorder %s27, %s28
      %p39 = scmp.eq.s32.totalorder %s19, 0
      %p40 = por %p38, %p39
      %p41 = scmp.ne.s32.totalorder %s27, %s28
      %p42 = scmp.eq.s32.totalorder %s20, 1
      %p43 = por %p41, %p42
      %p45 = scmp.ne.s32.totalorder %s28, %s44
      %p46 = scmp.eq.s32.totalorder %s20, 0
      %p47 = por %p45, %p46
      %s49 = sadd.s32 %s48, 1
      %p52 = scmp.eq.s32.totalorder %s14, 1
      %p53 = scmp.ne.s32.totalorder %s48, %s50
      %p54 = scmp.eq.s32.totalorder %s14, 0
      %p55 = por %p53, %p54
      %p56 = scmp.ne.s32.totalorder %s48, %s50
      %p57 = scmp.eq.s32.totalorder %s19, 1
      %p58 = por %p56, %p57
      %p59 = scmp.ne.s32.totalorder %s50, %s51
      %p60 = scmp.eq.s32.totalorder %s19, 0
      %p61 = por %p59, %p60
      %p62 = scmp.ne.s32.totalorder %s50, %s51
      %p63 = scmp.eq.s32.totalorder %s20, 1
      %p64 = por %p62, %p63
      %p66 = scmp.ne.s32.totalorder %s51, %s65
      %p67 = scmp.eq.s32.totalorder %s20, 0
      %p68 = por %p66, %p67
      %s70 = sadd.s32 %s69, 1
      %p73 = scmp.eq.s32.totalorder %s14, 1
      %p74 = scmp.ne.s32.totalorder %s69, %s71
      %p75 = scmp.eq.s32.totalorder %s14, 0
      %p76 = por %p74, %p75
      %p77 = scmp.ne.s32.totalorder %s69, %s71
      %p78 = scmp.eq.s32.totalorder %s19, 1
      %p79 = por %p77, %p78
      %p80 = scmp.ne.s32.totalorder %s71, %s72
      %p81 = scmp.eq.s32.totalorder %s19, 0
      %p82 = por %p80, %p81
      %p83 = scmp.ne.s32.totalorder %s71, %s72
      %p84 = scmp.eq.s32.totalorder %s20, 1
      %p85 = por %p83, %p84
      %p87 = scmp.ne.s32.totalorder %s72, %s86
      %p88 = scmp.eq.s32.totalorder %s20, 0
      %p89 = por %p87, %p88
      %s91 = sadd.s32 %s90, 1
      %p94 = scmp.eq.s32.totalorder %s14, 1
      %p95 = scmp.ne.s32.totalorder %s90, %s92
      %p96 = scmp.eq.s32.totalorder %s14, 0
      %p97 = por %p95, %p96
      %p98 = scmp.ne.s32.totalorder %s90, %s92
      %p99 = scmp.eq.s32.totalorder %s19, 1
      %p100 = por %p98, %p99
      %p101 = scmp.ne.s32.totalorder %s92, %s93
      %p102 = scmp.eq.s32.totalorder %s19, 0
      %p103 = por %p101, %p102
      %p104 = scmp.ne.s32.totalorder %s92, %s93
      %p105 = scmp.eq.s32.totalorder %s20, 1
      %p106 = por %p104, %p105
      %p108 = scmp.ne.s32.totalorder %s93, %s107
      %p109 = scmp.eq.s32.totalorder %s20, 0
      %p110 = por %p108, %p109
      %s112 = sadd.s32 %s111, 1
      %p115 = scmp.eq.s32.totalorder %s14, 1
      %p116 = scmp.ne.s32.totalorder %s111, %s113
      %p117 = scmp.eq.s32.totalorder %s14, 0
      %p118 = por %p116, %p117
      %p119 = scmp.ne.s32.totalorder %s111, %s113
      %p120 = scmp.eq.s32.totalorder %s19, 1
      %p121 = por %p119, %p120
      %p122 = scmp.ne.s32.totalorder %s113, %s114
      %p123 = scmp.eq.s32.totalorder %s19, 0
      %p124 = por %p122, %p123
      %p125 = scmp.ne.s32.totalorder %s113, %s114
      %p126 = scmp.eq.s32.totalorder %s20, 1
      %p127 = por %p125, %p126
      %p129 = scmp.ne.s32.totalorder %s114, %s128
      %p130 = scmp.eq.s32.totalorder %s20, 0
      %p131 = por %p129, %p130
      %s132 = ssub.s32 %s14, %s21
      %p133 = scmp.eq.s32.totalorder %s132, 0
      %s135 = sadd.s32 %s134, 1
      %s136 = scalar_select %p133, %s134, %s135
      %p139 = pneg %p133
      %p140 = scmp.eq.s32.totalorder %s14, 1
      %p141 = por %p139, %p140
      %p142 = scmp.ne.s32.totalorder %s134, %s137
      %p143 = scmp.eq.s32.totalorder %s14, 0
      %p144 = por %p142, %p143
      %p145 = scmp.ne.s32.totalorder %s134, %s137
      %p146 = scmp.eq.s32.totalorder %s19, 1
      %p147 = por %p145, %p146
      %p148 = scmp.ne.s32.totalorder %s137, %s138
      %p149 = scmp.eq.s32.totalorder %s19, 0
      %p150 = por %p148, %p149
      %p151 = scmp.ne.s32.totalorder %s137, %s138
      %p152 = scmp.eq.s32.totalorder %s20, 1
      %p153 = por %p151, %p152
      %p155 = scmp.ne.s32.totalorder %s138, %s154
      %p156 = scmp.eq.s32.totalorder %s20, 0
      %p157 = por %p155, %p156
      %p158 = scmp.le.s32.totalorder 1, %s14
      %p159 = scmp.lt.s32.totalorder %s14, 3
      %p160 = pnand %p158, %p159
      %p161 = pneg %p160
      // Predicated region
      $region9: #{tpu_custom_call.1} parent=5 // pred_check
        _
      $region10: #{tpu_custom_call.1} parent=5 // pred_check_branch
        %163 = sbr.rel (%p160) target = $region12
      $region11: #{tpu_custom_call.1} parent=5 // pred_region
        %s164 = ssub.s32 %s14, 1
        // Predicated region
        $region13: #{tpu_custom_call.1} parent=11 // pred_check
          %p165 = pneg %p61
        $region14: #{tpu_custom_call.1} parent=11 // pred_check_branch
          %167 = sbr.rel (%p165) target = $region16
        $region15: #{tpu_custom_call.1} parent=11 // pred_region
          _
        $region16: #{tpu_custom_call.1} parent=11 // pred_fallthru
          _
        // Predicated region
        $region17: #{tpu_custom_call.1} parent=11 // pred_check
          %p168 = pneg %p82
        $region18: #{tpu_custom_call.1} parent=11 // pred_check_branch
          %170 = sbr.rel (%p168) target = $region20
        $region19: #{tpu_custom_call.1} parent=11 // pred_region
          _
        $region20: #{tpu_custom_call.1} parent=11 // pred_fallthru
          _
        // Predicated region
        $region21: #{tpu_custom_call.1} parent=11 // pred_check
          %p171 = pneg %p103
        $region22: #{tpu_custom_call.1} parent=11 // pred_check_branch
          %173 = sbr.rel (%p171) target = $region24
        $region23: #{tpu_custom_call.1} parent=11 // pred_region
          _
        $region24: #{tpu_custom_call.1} parent=11 // pred_fallthru
          _
        // Predicated region
        $region25: #{tpu_custom_call.1} parent=11 // pred_check
          %p174 = pneg %p124
        $region26: #{tpu_custom_call.1} parent=11 // pred_check_branch
          %176 = sbr.rel (%p174) target = $region28
        $region27: #{tpu_custom_call.1} parent=11 // pred_region
          _
        $region28: #{tpu_custom_call.1} parent=11 // pred_fallthru
          _
      $region12: #{tpu_custom_call.1} parent=5 // pred_fallthru
        _
      %p177 = scmp.lt.s32.totalorder %s14, 2
      // Predicated region
      $region29: #{tpu_custom_call.1} parent=5 // pred_check
        %p178 = pneg %p177
      $region30: #{tpu_custom_call.1} parent=5 // pred_check_branch
        %180 = sbr.rel (%p178) target = $region32
      $region31: #{tpu_custom_call.1} parent=5 // pred_region
        // Predicated region
        $region33: #{tpu_custom_call.1} parent=31 // pred_check
          %p181 = pneg %p34
        $region34: #{tpu_custom_call.1} parent=31 // pred_check_branch
          %183 = sbr.rel (%p181) target = $region36
        $region35: #{tpu_custom_call.1} parent=31 // pred_region
          %p184 = scmp.lt.s32.totalorder %s14, 1
          %s185 = scalar_select %p184, %s14, 1
          %s186 = smul.addr %s185, 8
          %s187 = scalar_lea.vmem %s0, %s186
        $region36: #{tpu_custom_call.1} parent=31 // pred_fallthru
          _
      $region32: #{tpu_custom_call.1} parent=5 // pred_fallthru
        _
      %p188 = scmp.le.s32.totalorder 1, %s14
      %p189 = scmp.lt.s32.totalorder %s14, 3
      %p190 = pnand %p188, %p189
      %p191 = pneg %p190
      // Predicated region
      $region37: #{tpu_custom_call.1} parent=5 // pred_check
        _
      $region38: #{tpu_custom_call.1} parent=5 // pred_check_branch
        %193 = sbr.rel (%p190) target = $region40
      $region39: #{tpu_custom_call.1} parent=5 // pred_region
        %s194 = ssub.s32 %s14, 1
        %p195 = scmp.lt.s32.totalorder %s19, 1
        %s196 = scalar_select %p195, %s19, 1
        %s197 = smul.addr %s196, 8
        %s198 = scalar_lea.vmem %s0, %s197
        %p199 = pneg %p40
        %p200 = pneg %p37
        %p201 = pneg %p61
        %p202 = pneg %p58
        %p203 = pneg %p82
        %p204 = pneg %p79
        %p205 = pneg %p103
        %p206 = pneg %p100
        %p207 = pneg %p124
        %p208 = pneg %p121
        %p209 = pneg %p150
        %p210 = pneg %p147
        %s211 = sand.u32 %s137, 1
        %s212 = scalar_lea.sflag [#allocation3], %s211
        %s213 = sand.u32 %s137, 1
        %s214 = smul.addr %s213, 4
        %s215 = scalar_lea.vmem [#allocation2], %s214
        %p216 = scmp.lt.s32.totalorder %s19, 1
        %s217 = scalar_select %p216, %s19, 1
        %s218 = smul.addr %s217, 8
        %s219 = scalar_lea.vmem %s0, %s218
        %v220 = vld [vmem:[%s219] sm:$0xf]
        %v221 = vld [vmem:[%s1] sm:$0xff]
        %v222 = vld [vmem:[%s1 + $0x8] sm:$0xff]
        %v223 = vld [vmem:[%s1 + $0x10] sm:$0xff]
        %v224 = vld [vmem:[%s1 + $0x18] sm:$0xff]
        %v225 = vld [vmem:[%s2] sm:$0xff]
        %v226 = vld [vmem:[%s2 + $0x8] sm:$0xff]
        %v227 = vld [vmem:[%s2 + $0x10] sm:$0xff]
        %v228 = vld [vmem:[%s2 + $0x18] sm:$0xff]
        %230 = vset.pattern.permute.xlu0 0
        %231 = vperm.xlu0 %230, %v225
        %v232 = vpop.permute.xlu0 %231
        %235 = vset.pattern.permute.xlu0 0
        %236 = vperm.xlu0 %235, %v226
        %v237 = vpop.permute.xlu0 %236
        %240 = vset.pattern.permute.xlu0 0
        %241 = vperm.xlu0 %240, %v227
        %v242 = vpop.permute.xlu0 %241
        %245 = vset.pattern.permute.xlu0 0
        %246 = vperm.xlu0 %245, %v228
        %v247 = vpop.permute.xlu0 %246
        %vm249 = vcmask 31744
        %v251 = vsel %vm249, %v221, 0
        %v254 = vsel %vm249, %v222, 0
        %v257 = vsel %vm249, %v223, 0
        %v260 = vsel %vm249, %v224, 0
        %vm262 = vcmask 1043456
        %v264 = vsel %vm262, %v220, 0
        %266 = vmatprep.subr.mxu0 0.0
        %267 = vmatpush1.msra.mxu0 0.0
        %268 = vmatprep.subr.mxu0 0.0
        %269 = vmatpush1.msra.mxu0 0.0
        %270 = vmatprep.subr.mxu0 0.0
        %271 = vmatpush1.msra.mxu0 0.0
        %272 = vmatprep.subr.mxu0 0.0
        %273 = vmatpush1.msra.mxu0 0.0
        %274 = vmatprep.subr.mxu0 0.0
        %275 = vmatpush1.msra.mxu0 0.0
        %276 = vmatprep.subr.mxu0 0.0
        %277 = vmatpush1.msra.mxu0 0.0
        %278 = vmatprep.subr.mxu0 0.0
        %279 = vmatpush1.msra.mxu0 0.0
        %280 = vmatprep.subr.mxu0 0.0
        %281 = vmatpush1.msra.mxu0 0.0
        %282 = vmatprep.subr.mxu0 0.0
        %283 = vmatpush1.msra.mxu0 0.0
        %284 = vmatprep.subr.mxu0 0.0
        %285 = vmatpush1.msra.mxu0 0.0
        %286 = vmatprep.subr.mxu0 0.0
        %287 = vmatpush1.msra.mxu0 0.0
        %288 = vmatprep.subr.mxu0 0.0
        %289 = vmatpush1.msra.mxu0 0.0
        %290 = vmatprep.subr.mxu0 0.0
        %291 = vmatpush1.msra.mxu0 0.0
        %292 = vmatprep.subr.mxu0 0.0
        %293 = vmatpush1.msra.mxu0 0.0
        %294 = vmatprep.subr.mxu0 0.0
        %295 = vmatpush1.msra.mxu0 0.0
        %296 = vmatprep.subr.mxu0 0.0
        %297 = vmatpush1.msra.mxu0 %v264
        %298 = vmatprep.subr.mxu0 0.0
        %299 = vmatpush2.msra.mxu0 0.0
        %300 = vmatprep.subr.mxu0 0.0
        %301 = vmatpush2.msra.mxu0 0.0
        %302 = vmatprep.subr.mxu0 0.0
        %303 = vmatpush2.msra.mxu0 0.0
        %304 = vmatprep.subr.mxu0 0.0
        %305 = vmatpush2.msra.mxu0 0.0
        %306 = vmatprep.subr.mxu0 0.0
        %307 = vmatpush2.msra.mxu0 0.0
        %308 = vmatprep.subr.mxu0 0.0
        %309 = vmatpush2.msra.mxu0 0.0
        %310 = vmatprep.subr.mxu0 0.0
        %311 = vmatpush2.msra.mxu0 0.0
        %312 = vmatprep.subr.mxu0 0.0
        %313 = vmatpush2.msra.mxu0 0.0
        %314 = vmatprep.subr.mxu0 0.0
        %315 = vmatpush2.msra.mxu0 0.0
        %316 = vmatprep.subr.mxu0 0.0
        %317 = vmatpush2.msra.mxu0 0.0
        %318 = vmatprep.subr.mxu0 0.0
        %319 = vmatpush2.msra.mxu0 0.0
        %320 = vmatprep.subr.mxu0 0.0
        %321 = vmatpush2.msra.mxu0 0.0
        %322 = vmatprep.subr.mxu0 0.0
        %323 = vmatpush2.msra.mxu0 0.0
        %324 = vmatprep.subr.mxu0 0.0
        %325 = vmatpush2.msra.mxu0 0.0
        %326 = vmatprep.subr.mxu0 0.0
        %327 = vmatpush2.msra.mxu0 0.0
        %328 = vmatprep.subr.mxu0 0.0
        %329 = vmatpush2.msra.mxu0 0.0
        %330 = vmatprep.mubr.f32.mxu0 0.0
        %331 = vmatmul.mubr.f32.gmra.mxu0 %v251
        %v332 = vpop.f32.mrf.mxu0
        %v333 = vadd.f32 %v232, %v332
        %v334 = vpop.f32.mrf.mxu0
        %335 = vmatprep.mubr.f32.mxu0 0.0
        %336 = vmatmul.mubr.f32.gmra.mxu0 %v254
        %v337 = vpop.f32.mrf.mxu0
        %v338 = vadd.f32 %v237, %v337
        %v339 = vpop.f32.mrf.mxu0
        %340 = vmatprep.mubr.f32.mxu0 0.0
        %341 = vmatmul.mubr.f32.gmra.mxu0 %v257
        %v342 = vpop.f32.mrf.mxu0
        %v343 = vadd.f32 %v242, %v342
        %v344 = vpop.f32.mrf.mxu0
        %345 = vmatprep.mubr.f32.mxu0 0.0
        %346 = vmatmul.mubr.f32.gmra.mxu0 %v260
        %v347 = vpop.f32.mrf.mxu0
        %v348 = vadd.f32 %v247, %v347
        %v349 = vpop.f32.mrf.mxu0
        %350 = vdwg.mxu0
        %v351 = vtanh.pop %v333
        %v352 = vtanh.pop %v338
        %v353 = vtanh.pop %v343
        %v354 = vtanh.pop %v348
        %v355 = vld [vmem:[%s3] sm:$0xf]
        %v356 = vld [vmem:[%s4] sm:$0xf]
        %358 = vset.pattern.permute.xlu0 0
        %359 = vperm.xlu0 %358, %v356
        %v360 = vpop.permute.xlu0 %359
        %vm362 = vcmask 261120
        %v364 = vsel %vm362, %v355, 0
        %366 = vmatprep.subr.mxu0 0.0
        %367 = vmatpush1.msra.mxu0 0.0
        %368 = vmatprep.subr.mxu0 0.0
        %369 = vmatpush1.msra.mxu0 0.0
        %370 = vmatprep.subr.mxu0 0.0
        %371 = vmatpush1.msra.mxu0 0.0
        %372 = vmatprep.subr.mxu0 0.0
        %373 = vmatpush1.msra.mxu0 0.0
        %374 = vmatprep.subr.mxu0 0.0
        %375 = vmatpush1.msra.mxu0 0.0
        %376 = vmatprep.subr.mxu0 0.0
        %377 = vmatpush1.msra.mxu0 0.0
        %378 = vmatprep.subr.mxu0 0.0
        %379 = vmatpush1.msra.mxu0 0.0
        %380 = vmatprep.subr.mxu0 0.0
        %381 = vmatpush1.msra.mxu0 0.0
        %382 = vmatprep.subr.mxu0 0.0
        %383 = vmatpush1.msra.mxu0 0.0
        %384 = vmatprep.subr.mxu0 0.0
        %385 = vmatpush1.msra.mxu0 0.0
        %386 = vmatprep.subr.mxu0 0.0
        %387 = vmatpush1.msra.mxu0 0.0
        %388 = vmatprep.subr.mxu0 0.0
        %389 = vmatpush1.msra.mxu0 0.0
        %390 = vmatprep.subr.mxu0 0.0
        %391 = vmatpush1.msra.mxu0 %v354
        %392 = vmatprep.subr.mxu0 0.0
        %393 = vmatpush1.msra.mxu0 %v353
        %394 = vmatprep.subr.mxu0 0.0
        %395 = vmatpush1.msra.mxu0 %v352
        %396 = vmatprep.subr.mxu0 0.0
        %397 = vmatpush1.msra.mxu0 %v351
        %398 = vmatprep.subr.mxu0 0.0
        %399 = vmatpush2.msra.mxu0 0.0
        %400 = vmatprep.subr.mxu0 0.0
        %401 = vmatpush2.msra.mxu0 0.0
        %402 = vmatprep.subr.mxu0 0.0
        %403 = vmatpush2.msra.mxu0 0.0
        %404 = vmatprep.subr.mxu0 0.0
        %405 = vmatpush2.msra.mxu0 0.0
        %406 = vmatprep.subr.mxu0 0.0
        %407 = vmatpush2.msra.mxu0 0.0
        %408 = vmatprep.subr.mxu0 0.0
        %409 = vmatpush2.msra.mxu0 0.0
        %410 = vmatprep.subr.mxu0 0.0
        %411 = vmatpush2.msra.mxu0 0.0
        %412 = vmatprep.subr.mxu0 0.0
        %413 = vmatpush2.msra.mxu0 0.0
        %414 = vmatprep.subr.mxu0 0.0
        %415 = vmatpush2.msra.mxu0 0.0
        %416 = vmatprep.subr.mxu0 0.0
        %417 = vmatpush2.msra.mxu0 0.0
        %418 = vmatprep.subr.mxu0 0.0
        %419 = vmatpush2.msra.mxu0 0.0
        %420 = vmatprep.subr.mxu0 0.0
        %421 = vmatpush2.msra.mxu0 0.0
        %422 = vmatprep.subr.mxu0 0.0
        %423 = vmatpush2.msra.mxu0 0.0
        %424 = vmatprep.subr.mxu0 0.0
        %425 = vmatpush2.msra.mxu0 0.0
        %426 = vmatprep.subr.mxu0 0.0
        %427 = vmatpush2.msra.mxu0 0.0
        %428 = vmatprep.subr.mxu0 0.0
        %429 = vmatpush2.msra.mxu0 0.0
        %430 = vmatprep.mubr.f32.mxu0 0.0
        %431 = vmatmul.mubr.f32.gmra.mxu0 %v364
        %v432 = vpop.f32.mrf.mxu0
        %v433 = vadd.f32 %v360, %v432
        %v434 = vpop.f32.mrf.mxu0
        %435 = vdwg.mxu0
        %436 = vst [vmem:[%s215] sm:$0xf] %v433
        %s437 = sand.u32 %s137, 1
        %s438 = scalar_lea.sflag [#allocation3], %s437
        %s439 = sand.u32 %s137, 1
        %s440 = smul.addr %s439, 4
        %s441 = scalar_lea.vmem [#allocation2], %s440
        // Predicated region
        $region41: #{tpu_custom_call.1} parent=39 // pred_check
          %p442 = pneg %p147
        $region42: #{tpu_custom_call.1} parent=39 // pred_check_branch
          %444 = sbr.rel (%p442) target = $region44
        $region43: #{tpu_custom_call.1} parent=39 // pred_region
          %s446 = ssub.s32 64, 64
          %447 = vsyncadd %s438, %s446
          %s448 = smul.addr %s19, 64
          %s449 = scalar_lea.hbm %s5, %s448
          %s451 = sshll.u32 %s441, 4
          %s452 = int_to_ptr.vmem [resolvable:$true] %s451
          %454 = dma.vmem_to_hbm [thread:$0]  %s452, 64, %s449, %s438
        $region44: #{tpu_custom_call.1} parent=39 // pred_fallthru
          _
      $region40: #{tpu_custom_call.1} parent=5 // pred_fallthru
        _
      %p455 = scmp.le.s32.totalorder 2, %s14
      // Predicated region
      $region45: #{tpu_custom_call.1} parent=5 // pred_check
        %p456 = pneg %p455
      $region46: #{tpu_custom_call.1} parent=5 // pred_check_branch
        %458 = sbr.rel (%p456) target = $region48
      $region47: #{tpu_custom_call.1} parent=5 // pred_region
        %s459 = ssub.s32 %s14, 2
        // Predicated region
        $region49: #{tpu_custom_call.1} parent=47 // pred_check
          %p460 = pneg %p153
        $region50: #{tpu_custom_call.1} parent=47 // pred_check_branch
          %462 = sbr.rel (%p460) target = $region52
        $region51: #{tpu_custom_call.1} parent=47 // pred_region
          %s463 = sand.u32 %s138, 1
          %s464 = scalar_lea.sflag [#allocation3], %s463
          %s465 = sand.u32 %s138, 1
          %s466 = smul.addr %s465, 4
          %s467 = scalar_lea.vmem [#allocation2], %s466
          %468 = dma.done %s464, 64
        $region52: #{tpu_custom_call.1} parent=47 // pred_fallthru
          _
      $region48: #{tpu_custom_call.1} parent=5 // pred_fallthru
        _
    $region6: #{tpu_custom_call.1} parent=1 // loop_footer
      %s18 = sadd.s32 1, %s14
    $region7: #{tpu_custom_call.1} parent=1 // loop_footer_branch
      %13 = sbr.rel target = $region3
    $region8: #{tpu_custom_call.1} parent=1 // loop_exit
      _
    %469 = vsyncpa [#allocation3], 1
    %s470 = scalar_lea.sflag [#allocation3], 1
    %471 = vsyncpa %s470, 1

</llo_original>
